<compile_context>
chip_gen: v7x
topology: tpu7x:2x2x1
jax: 0.10.0
libtpu: 0.0.40
codegen_flags: <defaults>
</compile_context>

<pallas_src>
import jax
import jax.numpy as jnp
from jax.experimental import pallas as pl
from jax.experimental.pallas import tpu as pltpu

_SUB = 8  # f32 sublane multiple — all internal compute/layout is float32.


def _round_up(n, m):
    return ((n + m - 1) // m) * m


def _cdiv(a, b):
    return -(-a // b)


def _vmem_capacity_bytes():
    try:
        cap = getattr(pltpu.get_tpu_info(), "vmem_capacity_bytes", None)
        if cap:
            return int(cap)
    except Exception:
        pass
    return 64 * 2 ** 20  # conservative fallback (v7x physical VMEM per core)


def _choose_tile_rows(s_min, lane_bytes, halo, budget_bytes):
    """Rows per grid step, budgeted in lane-PADDED bytes.

    ~6 live copies of a (tile, lanes) f32 block per step: double-buffered input
    (2x) + double-buffered output (2x) + in-kernel load + accumulator.
    """
    per_buf_target = min(4 * 2 ** 20, budget_bytes // 6)
    t_budget = max(halo, per_buf_target // lane_bytes // halo * halo)
    # Keep per-buffer blocks >= ~1 MiB so the ~0.35 us/step overhead amortizes…
    t_floor = max(halo, min(t_budget, _round_up(_cdiv(1 << 20, lane_bytes), halo)))
    # …but prefer >= 4 grid steps so v7x's two TensorCores both get work.
    t_quarter = _round_up(_cdiv(s_min, 4), halo)
    tile = max(t_floor, min(t_budget, t_quarter))
    # Never exceed what the problem actually needs.
    return max(halo, min(tile, _round_up(s_min, halo)))


def _conv_rows_kernel(w_ref, x_ref, h_ref, o_ref):
    """One row-tile per grid step (all lanes).

    w_ref : (K,)      SMEM  shared conv taps
    x_ref : (T, GN)   VMEM  input rows  [i*T, (i+1)*T)
    h_ref : (H, GN)   VMEM  halo rows   [(i+1)*T, (i+1)*T + H),  H >= K-1
    o_ref : (T, GN)   VMEM  output rows [i*T, (i+1)*T)
    """
    K = w_ref.shape[0]
    T = o_ref.shape[0]
    H = h_ref.shape[0]
    head = T - H

    x = x_ref[...]
    if head > 0:
        # Rows [0, head): every tap window stays inside the main block.
        acc = w_ref[0] * x[0:head]
        for k in range(1, K):
            acc = acc + w_ref[k] * x[k:k + head]
        o_ref[0:head, :] = acc

    # Rows [head, T): tap windows spill into the halo block.  Only 2*H rows are
    # concatenated here (not the whole tile), so this copy is negligible.
    tail = jnp.concatenate([x[head:T], h_ref[...]], axis=0)        # (2H, GN)
    acc_t = w_ref[0] * tail[0:H]
    for k in range(1, K):
        acc_t = acc_t + w_ref[k] * tail[k:k + H]
    o_ref[head:T, :] = acc_t


def _forward_real_f32(x, w):
    """x: (B, L, F) real float, w: (K,) f32 -> (B, L_out, F) float32."""
    B, L, F = x.shape
    K = int(w.shape[0])
    if L < K:
        raise ValueError(f"sequence length {L} must be >= kernel_size {K}")
    L_out = L - K + 1
    N = B * F

    halo = max(_SUB, _round_up(K - 1, _SUB))

    # Lane folding: with N = B*F typically << 128, fold G overlapping segments
    # of the sequence onto the lane axis so each row carries ~128 useful lanes.
    G = 1 if N >= 128 else max(1, min(128 // N, L_out))
    GN = G * N

    s_min = _cdiv(L_out, G)                  # output rows per segment (unpadded)
    cap = _vmem_capacity_bytes()
    budget = min(cap // 2, 64 * 2 ** 20)
    vmem_limit = int(min(cap * 3 // 4, 64 * 2 ** 20))
    tile = _choose_tile_rows(s_min, _round_up(GN, 128) * 4, halo, budget)
    num_tiles = _cdiv(s_min, tile)
    S = num_tiles * tile                     # padded output rows per segment
    R_in = G * S + halo                      # input rows required (>= L)

    # (B, L, F) -> lane-dense (L, B*F); fold G segments (with a halo-row overlap
    # so the conv never crosses a lane-group boundary) onto the lane axis.  The
    # cast, transpose, small row pad and segment concat all belong to this one
    # fold materialization (no separate full-array pad/copy pass).
    x2d = jnp.transpose(x, (1, 0, 2)).reshape(L, N).astype(jnp.float32)
    if R_in > L:
        x2d = jnp.pad(x2d, ((0, R_in - L), (0, 0)))
    if G == 1:
        xin = x2d                                                   # (S+halo, N)
    else:
        xin = jnp.concatenate(
            [x2d[g * S:g * S + S + halo, None, :] for g in range(G)], axis=1
        ).reshape(S + halo, GN)

    hb = tile // halo                        # halo blocks per row tile

    out = pl.pallas_call(
        _conv_rows_kernel,
        out_shape=jax.ShapeDtypeStruct((S, GN), jnp.float32),
        grid_spec=pltpu.PrefetchScalarGridSpec(
            num_scalar_prefetch=0,
            grid=(num_tiles,),
            in_specs=[
                pl.BlockSpec(memory_space=pltpu.MemorySpace.SMEM),      # w (K,)
                pl.BlockSpec((tile, GN), lambda i: (i, 0)),             # main
                pl.BlockSpec((halo, GN), lambda i: ((i + 1) * hb, 0)),  # halo
            ],
            out_specs=pl.BlockSpec((tile, GN), lambda i: (i, 0)),
        ),
        compiler_params=pltpu.CompilerParams(
            dimension_semantics=("parallel",),
            vmem_limit_bytes=vmem_limit,
        ),
        cost_estimate=pl.CostEstimate(
            flops=2 * K * S * GN,
            transcendentals=0,
            bytes_accessed=4 * GN * (2 * S + halo),
        ),
    )(w, xin, xin)

    # Unfold: (S, G*B*F) -> (B, G*S, F), trim the padded positions.
    y = out.reshape(S, G, B, F).transpose(2, 1, 0, 3).reshape(B, G * S, F)
    return y[:, :L_out, :]


def shared_kernel_conv1d(x, w):
    """Forward pass of SharedKernelConv1d.

    x: (B, L, Ci) real or complex; w: (K,) (or torch-style (1, 1, K)) taps.
    Returns (B, L - K + 1, Ci).
    """
    w = jnp.asarray(w).reshape(-1).astype(jnp.float32)
    x = jnp.asarray(x)

    if jnp.iscomplexobj(x):
        # TODO(synk): Pallas TPU has no fp64 — complex128 runs at c64 precision.
        x = x.astype(jnp.complex64)
        B, L, Ci = x.shape
        # Interleave (re, im) on the channel axis and run ONE real kernel; this
        # fuses with the lane-fold transpose into a single materialization.
        xf = jnp.stack([jnp.real(x), jnp.imag(x)], axis=-1).reshape(B, L, 2 * Ci)
        yf = _forward_real_f32(xf, w)
        yf = yf.reshape(B, yf.shape[1], Ci, 2)
        return jax.lax.complex(yf[..., 0], yf[..., 1])

    # TODO(synk): float64 inputs run at float32 precision (no fp64 on TPU).
    out_dtype = jnp.float32 if x.dtype == jnp.float64 else x.dtype
    y = _forward_real_f32(x.astype(jnp.float32), w)
    return y.astype(out_dtype)


def _reference(x, w):
    """Pure-JAX reference: cross-correlation along L, shared over (B, Ci)."""
    K = w.shape[0]
    L_out = x.shape[1] - K + 1

    def one(xr):
        return sum(w[k] * xr[:, k:k + L_out, :] for k in range(K))

    if jnp.iscomplexobj(x):
        return one(jnp.real(x)) + 1j * one(jnp.imag(x))
    return one(x)


if __name__ == "__main__":
    key = jax.random.PRNGKey(0)
    k1, k2, k3, k4, k5 = jax.random.split(key, 5)

    # --- complex input, module-like small shapes -----------------------------
    B, L, Ci, K = 2, 16, 4, 5
    x = (jax.random.normal(k1, (B, L, Ci), jnp.float32)
         + 1j * jax.random.normal(k2, (B, L, Ci), jnp.float32)).astype(jnp.complex64)
    # Module __init__ zero-inits the conv weight; use nonzero taps so the
    # numerical check is meaningful.
    w = jax.random.normal(k3, (K,), jnp.float32)

    y = jax.block_until_ready(shared_kernel_conv1d(x, w))
    assert y.shape == (B, L - K + 1, Ci)
    assert y.dtype == jnp.complex64
    assert jnp.allclose(y, _reference(x, w), atol=1e-5, rtol=1e-5)

    # --- real input, longer sequence (exercises lane folding + head/tail) ----
    B2, L2, Ci2, K2 = 2, 1024, 2, 7
    x2 = jax.random.normal(k4, (B2, L2, Ci2), jnp.float32)
    w2 = jax.random.normal(k5, (K2,), jnp.float32)
    y2 = jax.block_until_ready(shared_kernel_conv1d(x2, w2))
    assert y2.shape == (B2, L2 - K2 + 1, Ci2)
    assert jnp.allclose(y2, _reference(x2, w2), atol=1e-4, rtol=1e-4)

    # --- wide batch (B*Ci >= 128: no folding, multi-tile "parallel" grid) ----
    B3, L3, Ci3 = 64, 4096, 2
    x3 = jax.random.normal(k4, (B3, L3, Ci3), jnp.float32)
    y3 = jax.block_until_ready(shared_kernel_conv1d(x3, w))
    assert y3.shape == (B3, L3 - K + 1, Ci3)
    assert jnp.allclose(y3, _reference(x3, w), atol=1e-4, rtol=1e-4)

    print("KERNEL_OK")
</pallas_src>

<mosaic_0001>
module attributes {stable_mosaic.version = 11 : i64} {
  func.func @_conv_rows_kernel(%arg0: i32, %arg1: memref<5xf32, #tpu.memory_space<smem>>, %arg2: memref<8x128xf32, #tpu.memory_space<vmem>>, %arg3: memref<8x128xf32, #tpu.memory_space<vmem>>, %arg4: memref<8x128xf32, #tpu.memory_space<vmem>>) attributes {dimension_semantics = [#tpu.dimension_semantics<parallel>], iteration_bounds = array<i64: 1>, scalar_prefetch = 0 : i64, scratch_operands = 0 : i64, tpu.core_type = #tpu.core_type<tc>, window_params = [{transform_indices = @transform_0, window_bounds = array<i64: 5>}, {transform_indices = @transform_1, window_bounds = array<i64: 8, 128>}, {transform_indices = @transform_2, window_bounds = array<i64: 8, 128>}, {transform_indices = @transform_3, window_bounds = array<i64: 8, 128>}]} {
    %c0 = arith.constant 0 : index
    %c0_0 = arith.constant 0 : index
    %0 = vector.load %arg2[%c0, %c0_0] : memref<8x128xf32, #tpu.memory_space<vmem>>, vector<8x128xf32>
    %c0_1 = arith.constant 0 : index
    %c0_2 = arith.constant 0 : index
    %1 = vector.load %arg3[%c0_1, %c0_2] : memref<8x128xf32, #tpu.memory_space<vmem>>, vector<8x128xf32>
    %2 = tpu.concatenate %0, %1 in 0 : vector<8x128xf32>, vector<8x128xf32> -> vector<16x128xf32>
    %c0_3 = arith.constant 0 : index
    %3 = memref.load %arg1[%c0_3] : memref<5xf32, #tpu.memory_space<smem>>
    %4 = vector.extract_strided_slice %2 {offsets = [0, 0], sizes = [8, 128], strides = [1, 1]} : vector<16x128xf32> to vector<8x128xf32>
    %5 = vector.broadcast %3 : f32 to vector<8x128xf32>
    %6 = arith.mulf %5, %4 : vector<8x128xf32>
    %c1 = arith.constant 1 : index
    %7 = memref.load %arg1[%c1] : memref<5xf32, #tpu.memory_space<smem>>
    %8 = vector.extract_strided_slice %2 {offsets = [1, 0], sizes = [8, 128], strides = [1, 1]} : vector<16x128xf32> to vector<8x128xf32>
    %9 = vector.broadcast %7 : f32 to vector<8x128xf32>
    %10 = arith.mulf %9, %8 : vector<8x128xf32>
    %11 = arith.addf %6, %10 : vector<8x128xf32>
    %c2 = arith.constant 2 : index
    %12 = memref.load %arg1[%c2] : memref<5xf32, #tpu.memory_space<smem>>
    %13 = vector.extract_strided_slice %2 {offsets = [2, 0], sizes = [8, 128], strides = [1, 1]} : vector<16x128xf32> to vector<8x128xf32>
    %14 = vector.broadcast %12 : f32 to vector<8x128xf32>
    %15 = arith.mulf %14, %13 : vector<8x128xf32>
    %16 = arith.addf %11, %15 : vector<8x128xf32>
    %c3 = arith.constant 3 : index
    %17 = memref.load %arg1[%c3] : memref<5xf32, #tpu.memory_space<smem>>
    %18 = vector.extract_strided_slice %2 {offsets = [3, 0], sizes = [8, 128], strides = [1, 1]} : vector<16x128xf32> to vector<8x128xf32>
    %19 = vector.broadcast %17 : f32 to vector<8x128xf32>
    %20 = arith.mulf %19, %18 : vector<8x128xf32>
    %21 = arith.addf %16, %20 : vector<8x128xf32>
    %c4 = arith.constant 4 : index
    %22 = memref.load %arg1[%c4] : memref<5xf32, #tpu.memory_space<smem>>
    %23 = vector.extract_strided_slice %2 {offsets = [4, 0], sizes = [8, 128], strides = [1, 1]} : vector<16x128xf32> to vector<8x128xf32>
    %24 = vector.broadcast %22 : f32 to vector<8x128xf32>
    %25 = arith.mulf %24, %23 : vector<8x128xf32>
    %26 = arith.addf %21, %25 : vector<8x128xf32>
    %c0_4 = arith.constant 0 : index
    %c0_5 = arith.constant 0 : index
    %27 = vector.load %arg4[%c0_4, %c0_5] : memref<8x128xf32, #tpu.memory_space<vmem>>, vector<8x128xf32>
    tpu.vector_store %arg4[%c0_4, %c0_5], %26 {strides = array<i32>} : memref<8x128xf32, #tpu.memory_space<vmem>>, vector<8x128xf32>,
    return
  }
  func.func @transform_0(%arg0: i32) -> i32 {
    %c0_i32 = arith.constant 0 : i32
    %c0_i32_0 = arith.constant 0 : i32
    return %c0_i32 : i32
  }
  func.func @transform_1(%arg0: i32) -> (i32, i32) {
    %c0_i32 = arith.constant 0 : i32
    %c0_i32_0 = arith.constant 0 : i32
    return %arg0, %c0_i32 : i32, i32
  }
  func.func @transform_2(%arg0: i32) -> (i32, i32) {
    %c1_i32 = arith.constant 1 : i32
    %0 = arith.addi %arg0, %c1_i32 : i32
    %c1_i32_0 = arith.constant 1 : i32
    %1 = arith.muli %0, %c1_i32_0 : i32
    %c0_i32 = arith.constant 0 : i32
    %c0_i32_1 = arith.constant 0 : i32
    return %1, %c0_i32 : i32, i32
  }
  func.func @transform_3(%arg0: i32) -> (i32, i32) {
    %c0_i32 = arith.constant 0 : i32
    %c0_i32_0 = arith.constant 0 : i32
    return %arg0, %c0_i32 : i32, i32
  }
}

</mosaic_0001>

<llo_original>
// kernel: tpu_custom_call.1
$region0: #{tpu_custom_call.1}
  #allocation0 [shape = 'u32[]', space=smem, size = 0x4, offset = 0x4, fixed_abs, tag = 'smem constant byte address 0x4 - core index']
  #allocation1 [shape = 'u32[144,128]{1,0:T(1,128)}', space=vmem, size = 0x12000, scoped, tag = 'internal scratch']
  %s0 = inlined_call_operand.hbm [shape: f32[5], index: 0, kind: input, shape index: {}]
  %s1 = inlined_call_operand.hbm [shape: f32[16,128], index: 1, kind: input, shape index: {}]
  %s2 = inlined_call_operand.hbm [shape: f32[16,128], index: 2, kind: input, shape index: {}]
  %s3 = inlined_call_operand.hbm [shape: f32[8,128], index: 3, kind: output, shape index: {}]
  %s4 = sld [smem:[#allocation0]]
  $region34: #{tpu_custom_call.1} parent=0
    _
  %s6 = ssub.s32 1, %s4
  %s7 = scalar_select 0, %s6, %s4
  $region1: #{tpu_custom_call.1} parent=0
    #allocation2 [shape = 'u8[512]{0}', space=smem, size = 0x200, scoped, tag = 'input window, operand 0, single buffered']
    #allocation3 [shape = 's32[1]{0}', space=sflag, size = 0x4, scoped, tag = 'scoped memory for tpu_custom_call.1']
    #allocation4 [shape = 's32[1]{0}', space=sflag, size = 0x4, scoped, tag = 'scoped memory for tpu_custom_call.1']
    #allocation5 [shape = 's32[1]{0}', space=sflag, size = 0x4, scoped, tag = 'scoped memory for tpu_custom_call.1']
    #allocation6 [shape = 'u8[4096]{0}', space=vmem, size = 0x1000, scoped, tag = 'input window, operand 1, single buffered']
    #allocation7 [shape = 'u8[4096]{0}', space=vmem, size = 0x1000, scoped, tag = 'input window, operand 2, single buffered']
    #allocation8 [shape = 's32[1]{0}', space=sflag, size = 0x4, scoped, tag = 'scoped memory for tpu_custom_call.1']
    #allocation9 [shape = 'u8[4096]{0}', space=vmem, size = 0x1000, scoped, tag = 'output window, operand 0, single buffered']
    %8 = vsyncpa [#allocation5], 0
    %9 = vsyncpa [#allocation3], 0
    %10 = vsyncpa [#allocation8], 0
    %11 = vsyncpa [#allocation4], 0
    // Predicated region
    $region2: #{tpu_custom_call.1} parent=1 // pred_check
      _
    $region3: #{tpu_custom_call.1} parent=1 // pred_check_branch
      %13 = sbr.rel (0) target = $region5
    $region4: #{tpu_custom_call.1} parent=1 // pred_region
      %s15 = ssub.s32 16, 16
      %16 = vsyncadd [#allocation5], %s15
      %19 = dma.hbm_to_smem %s0, 16, [#allocation2], [#allocation5]
    $region5: #{tpu_custom_call.1} parent=1 // pred_fallthru
      _
    // Predicated region
    $region6: #{tpu_custom_call.1} parent=1 // pred_check
      _
    $region7: #{tpu_custom_call.1} parent=1 // pred_check_branch
      %21 = sbr.rel (0) target = $region9
    $region8: #{tpu_custom_call.1} parent=1 // pred_region
      %s23 = ssub.s32 128, 128
      %24 = vsyncadd [#allocation3], %s23
      %s26 = sshll.u32 [#allocation6], 4
      %s27 = int_to_ptr.vmem [resolvable:$true] %s26
      %29 = dma.hbm_to_vmem [thread:$0]  %s1, 128, %s27, [#allocation3]
    $region9: #{tpu_custom_call.1} parent=1 // pred_fallthru
      _
    // Predicated region
    $region10: #{tpu_custom_call.1} parent=1 // pred_check
      _
    $region11: #{tpu_custom_call.1} parent=1 // pred_check_branch
      %31 = sbr.rel (0) target = $region13
    $region12: #{tpu_custom_call.1} parent=1 // pred_region
      %s32 = sadd.s32 0, 1
      %s34 = ssub.s32 128, 128
      %35 = vsyncadd [#allocation8], %s34
      %s36 = smul.addr %s32, 128
      %s37 = scalar_lea.hbm %s2, %s36
      %s39 = sshll.u32 [#allocation7], 4
      %s40 = int_to_ptr.vmem [resolvable:$true] %s39
      %42 = dma.hbm_to_vmem [thread:$0]  %s37, 128, %s40, [#allocation8]
    $region13: #{tpu_custom_call.1} parent=1 // pred_fallthru
      _
    // Predicated region
    $region14: #{tpu_custom_call.1} parent=1 // pred_check
      _
    $region15: #{tpu_custom_call.1} parent=1 // pred_check_branch
      %44 = sbr.rel (0) target = $region17
    $region16: #{tpu_custom_call.1} parent=1 // pred_region
      %45 = dma.done [#allocation5], 16
    $region17: #{tpu_custom_call.1} parent=1 // pred_fallthru
      _
    // Predicated region
    $region18: #{tpu_custom_call.1} parent=1 // pred_check
      _
    $region19: #{tpu_custom_call.1} parent=1 // pred_check_branch
      %47 = sbr.rel (0) target = $region21
    $region20: #{tpu_custom_call.1} parent=1 // pred_region
      %48 = dma.done [#allocation3], 128
    $region21: #{tpu_custom_call.1} parent=1 // pred_fallthru
      _
    // Predicated region
    $region22: #{tpu_custom_call.1} parent=1 // pred_check
      _
    $region23: #{tpu_custom_call.1} parent=1 // pred_check_branch
      %50 = sbr.rel (0) target = $region25
    $region24: #{tpu_custom_call.1} parent=1 // pred_region
      %51 = dma.done [#allocation8], 128
    $region25: #{tpu_custom_call.1} parent=1 // pred_fallthru
      _
    %52 = sfence
    %s53 = sadd.s32 0, 1
    %v54 = vld [vmem:[#allocation6] sm:$0xff]
    %v55 = vld [vmem:[#allocation7] sm:$0xff]
    %s56 = sld [smem:[#allocation2]]
    %v57 = vstv %s56
    %v58 = vmul.f32 %v57, %v54
    %s59 = sld [smem:[#allocation2 + $0x1]]
    %v60 = vstv %s59
    %v61 = vmul.f32 %v60, %v54
    %v62 = vmul.f32 %v60, %v55
    %vm65 = vcmask 1046528
    %v66 = vrot.slane %v61, 1
    %v67 = vrot.slane %v62, 1
    %v68 = vsel %vm65, %v66, %v67
    %v70 = vadd.f32 %v58, %v68
    %s71 = sld [smem:[#allocation2 + $0x2]]
    %v72 = vstv %s71
    %v73 = vmul.f32 %v72, %v54
    %v74 = vmul.f32 %v72, %v55
    %vm77 = vcmask 1045504
    %v78 = vrot.slane %v73, 2
    %v79 = vrot.slane %v74, 2
    %v80 = vsel %vm77, %v78, %v79
    %v82 = vadd.f32 %v70, %v80
    %s83 = sld [smem:[#allocation2 + $0x3]]
    %v84 = vstv %s83
    %v85 = vmul.f32 %v84, %v54
    %v86 = vmul.f32 %v84, %v55
    %vm89 = vcmask 1044480
    %v90 = vrot.slane %v85, 3
    %v91 = vrot.slane %v86, 3
    %v92 = vsel %vm89, %v90, %v91
    %v94 = vadd.f32 %v82, %v92
    %s95 = sld [smem:[#allocation2 + $0x4]]
    %v96 = vstv %s95
    %v97 = vmul.f32 %v96, %v54
    %v98 = vmul.f32 %v96, %v55
    %vm101 = vcmask 1043456
    %v102 = vrot.slane %v97, 4
    %v103 = vrot.slane %v98, 4
    %v104 = vsel %vm101, %v102, %v103
    %v106 = vadd.f32 %v94, %v104
    %107 = vst [vmem:[#allocation9] sm:$0xff] %v106
    // Predicated region
    $region26: #{tpu_custom_call.1} parent=1 // pred_check
      _
    $region27: #{tpu_custom_call.1} parent=1 // pred_check_branch
      %109 = sbr.rel (0) target = $region29
    $region28: #{tpu_custom_call.1} parent=1 // pred_region
      %s111 = ssub.s32 128, 128
      %112 = vsyncadd [#allocation4], %s111
      %s114 = sshll.u32 [#allocation9], 4
      %s115 = int_to_ptr.vmem [resolvable:$true] %s114
      %117 = dma.vmem_to_hbm [thread:$0]  %s115, 128, %s3, [#allocation4]
    $region29: #{tpu_custom_call.1} parent=1 // pred_fallthru
      _
    // Predicated region
    $region30: #{tpu_custom_call.1} parent=1 // pred_check
      _
    $region31: #{tpu_custom_call.1} parent=1 // pred_check_branch
      %119 = sbr.rel (0) target = $region33
    $region32: #{tpu_custom_call.1} parent=1 // pred_region
      %120 = dma.done [#allocation4], 128
    $region33: #{tpu_custom_call.1} parent=1 // pred_fallthru
      _
    %121 = vsyncpa [#allocation3], 1
    %122 = vsyncpa [#allocation8], 1
    %123 = vsyncpa [#allocation4], 1
    %124 = vsyncpa [#allocation5], 1

</llo_original>
